<compile_context>
chip_gen: v6e
topology: v6e:2x2x1
jax: 0.10.0
libtpu: 0.0.40
codegen_flags: <defaults>
</compile_context>

<pallas_src>
import jax
import jax.numpy as jnp
from jax.experimental import pallas as pl
from jax.experimental.pallas import tpu as pltpu

LANE = 128
SUBLANE = 8
TILE_ELEMS = SUBLANE * LANE     # 1024
HARD_TILE_CAP = 16384           # rows (8 MiB f32 per input block)


def _make_partial_dot_kernel(tile_r, acc_r, steps, rows, mask_needed):
    """One grid step: o(acc_r,128) += group-sum of x*w over one (tile_r,128) tile."""

    def kernel(x_ref, w_ref, o_ref):
        s = pl.program_id(0)
        i = pl.program_id(1)

        @pl.when(i == 0)
        def _init():
            o_ref[...] = jnp.zeros_like(o_ref)

        # Cast in-kernel (HBM reads stay at the input dtype width).
        prod = x_ref[...].astype(jnp.float32) * w_ref[...].astype(jnp.float32)

        def _accumulate(p):
            # VPU-only partial reduction into acc_r independent sublane groups;
            # the cross-lane/cross-sublane (XLU) reduce is deferred to the wrapper.
            o_ref[...] += p.reshape(tile_r // acc_r, acc_r, LANE).sum(axis=0)

        if mask_needed:
            # Logical (unclamped) first row of this step. Only the final logical
            # block (and the fully-OOB duplicate step of an odd 2-way split)
            # pays for the mask; all other steps stay pure mul+add.
            row0 = (s * steps + i) * tile_r

            @pl.when(row0 + tile_r <= rows)
            def _full():
                _accumulate(prod)

            @pl.when(row0 + tile_r > rows)
            def _partial():
                rid = row0 + jax.lax.broadcasted_iota(jnp.int32, (tile_r, LANE), 0)
                # True select: garbage (possibly NaN/Inf) rows are replaced, not scaled.
                _accumulate(jnp.where(rid < rows, prod, 0.0))
        else:
            _accumulate(prod)

    return kernel


def _pick_tile_rows(rows, in_item_bytes, max_tile_rows=None):
    """Generation-aware tile size: biggest block that leaves VMEM headroom."""
    try:
        vmem_cap = int(pltpu.get_tpu_info().vmem_capacity_bytes)
    except Exception:
        vmem_cap = 64 << 20   # conservative fallback (v7x per-TC VMEM)
    budget = vmem_cap // 3                      # 2 inputs x 2 buffers <= ~1/3 VMEM
    cap = budget // (2 * LANE * in_item_bytes)
    cap = max(SUBLANE, (cap // 256) * 256)
    cap = min(cap, HARD_TILE_CAP)
    if max_tile_rows is not None:
        cap = min(cap, max(SUBLANE, (max_tile_rows // SUBLANE) * SUBLANE))
    return min(cap, rows)


def dot_hardsigmoid(x, w, *, max_tile_rows=None):
    """broadcast_to(hardsigmoid(flatten(x) . flatten(w)), x.shape), Pallas-accelerated."""
    assert x.size == w.size, "w must have the same number of elements as x"
    n = x.size
    xf = x.reshape(-1)
    wf = w.reshape(-1)

    n_main = (n // TILE_ELEMS) * TILE_ELEMS     # largest 1024-aligned prefix
    l1 = jnp.float32(0.0)

    if n_main:
        rows = n_main // LANE                   # multiple of 8
        x2 = xf[:n_main].reshape(rows, LANE)
        w2 = wf[:n_main].reshape(rows, LANE)

        in_item = x2.dtype.itemsize + w2.dtype.itemsize
        tile_r = _pick_tile_rows(rows, in_item, max_tile_rows)
        acc_r = 32 if tile_r % 32 == 0 else SUBLANE

        num_blocks = -(-rows // tile_r)
        nsplit = 2 if num_blocks >= 2 else 1    # shard reduction across v7x TCs
        steps = -(-num_blocks // nsplit)
        mask_needed = (rows % tile_r != 0) or (nsplit * steps != num_blocks)

        last_block = num_blocks - 1
        if nsplit * steps != num_blocks:
            # One logical step is past the end; clamp its DMA to a valid block,
            # the in-kernel mask zeroes its (duplicated) contribution.
            def in_map(s, i):
                return (jnp.minimum(s * steps + i, last_block), 0)
        else:
            def in_map(s, i):
                return (s * steps + i, 0)

        vmem_limit = int(2 * tile_r * LANE * in_item       # double-buffered inputs
                         + 2 * nsplit * acc_r * LANE * 4   # accumulator blocks
                         + (8 << 20))                      # headroom

        partials = pl.pallas_call(
            _make_partial_dot_kernel(tile_r, acc_r, steps, rows, mask_needed),
            out_shape=jax.ShapeDtypeStruct((nsplit * acc_r, LANE), jnp.float32),
            grid=(nsplit, steps),
            in_specs=[
                pl.BlockSpec((tile_r, LANE), in_map),
                pl.BlockSpec((tile_r, LANE), in_map),
            ],
            out_specs=pl.BlockSpec((acc_r, LANE), lambda s, i: (s, 0)),
            compiler_params=pltpu.CompilerParams(
                dimension_semantics=("parallel", "arbitrary"),
                vmem_limit_bytes=vmem_limit,
            ),
            cost_estimate=pl.CostEstimate(
                flops=2 * n_main,
                transcendentals=0,
                bytes_accessed=int(n_main * in_item + nsplit * acc_r * LANE * 4),
            ),
        )(x2, w2)

        l1 = l1 + jnp.sum(partials)

    if n_main < n:
        # Ragged (<1024-element) tail: tiny, do it directly -- no padded HBM copies.
        l1 = l1 + jnp.dot(xf[n_main:].astype(jnp.float32),
                          wf[n_main:].astype(jnp.float32))

    # hard-sigmoid: l2=l1+3; l3=clamp_min(l2,0); l4=clamp_max(l3,6); l5=l4/6
    l5 = jnp.clip(l1 + 3.0, 0.0, 6.0) / 6.0
    # v2 = l5.view(x1.shape) -> broadcast the scalar result back to x1's shape.
    return jnp.broadcast_to(l5, x.shape).astype(x.dtype)


if __name__ == "__main__":
    key = jax.random.PRNGKey(0)
    kx, kw = jax.random.split(key)

    def _ref(x, w):
        l1 = jnp.dot(x.reshape(-1).astype(jnp.float32), w.reshape(-1).astype(jnp.float32))
        l5 = jnp.clip(l1 + 3.0, 0.0, 6.0) / 6.0
        return jnp.broadcast_to(l5, x.shape).astype(x.dtype)

    # Primary shape implied by the module: an NCHW activation and w with equal numel.
    x = jax.random.normal(kx, (2, 4, 16, 16), dtype=jnp.float32)
    w = jax.random.normal(kw, (2 * 4 * 16 * 16,), dtype=jnp.float32) * 1e-2  # unsaturated dot
    y = dot_hardsigmoid(x, w)
    jax.block_until_ready(y)
    assert y.shape == x.shape
    assert jnp.allclose(y, _ref(x, w), atol=1e-5, rtol=1e-5)

    # Saturated path (un-scaled weights) - exercises the clamp.
    ws = jax.random.normal(kw, (x.size,), dtype=jnp.float32)
    assert jnp.allclose(dot_hardsigmoid(x, ws), _ref(x, ws), atol=1e-5, rtol=1e-5)

    # Ragged tail (<1024-element remainder handled wrapper-side, no padding).
    xr = jax.random.normal(kx, (3, 5, 7, 11), dtype=jnp.float32)        # 1155 elems
    wr = jax.random.normal(kw, (3 * 5 * 7 * 11,), dtype=jnp.float32) * 1e-2
    assert jnp.allclose(dot_hardsigmoid(xr, wr), _ref(xr, wr), atol=1e-5, rtol=1e-5)

    # Multi-block, odd block count -> 2-way split with a clamped + masked OOB step.
    xm = jax.random.normal(kx, (4, 8, 32, 32), dtype=jnp.float32)       # 256 rows
    wm = jax.random.normal(kw, (4 * 8 * 32 * 32,), dtype=jnp.float32) * 1e-3
    ym = dot_hardsigmoid(xm, wm, max_tile_rows=40)                      # 7 blocks of 40 rows
    assert jnp.allclose(ym, _ref(xm, wm), atol=1e-4, rtol=1e-4)

    # Multi-block, even block count -> clean 2-way split, wide (32,128) accumulator.
    ye = dot_hardsigmoid(xm, wm, max_tile_rows=64)                      # 4 blocks of 64 rows
    assert jnp.allclose(ye, _ref(xm, wm), atol=1e-4, rtol=1e-4)

    print("KERNEL_OK")
</pallas_src>

<mosaic_0001>
module attributes {stable_mosaic.version = 11 : i64} {
  func.func @kernel(%arg0: i32, %arg1: i32, %arg2: memref<16x128xf32, #tpu.memory_space<vmem>>, %arg3: memref<16x128xf32, #tpu.memory_space<vmem>>, %arg4: memref<8x128xf32, #tpu.memory_space<vmem>>) attributes {dimension_semantics = [#tpu.dimension_semantics<parallel>, #tpu.dimension_semantics<arbitrary>], iteration_bounds = array<i64: 1, 1>, scalar_prefetch = 0 : i64, scratch_operands = 0 : i64, tpu.core_type = #tpu.core_type<tc>, window_params = [{transform_indices = @transform_0, window_bounds = array<i64: 16, 128>}, {transform_indices = @transform_1, window_bounds = array<i64: 16, 128>}, {transform_indices = @transform_2, window_bounds = array<i64: 8, 128>}]} {
    %c0_i32 = arith.constant 0 : i32
    %0 = arith.cmpi eq, %arg1, %c0_i32 : i32
    %1 = arith.extui %0 : i1 to i32
    %c0_i32_0 = arith.constant 0 : i32
    %2 = arith.cmpi ne, %1, %c0_i32_0 : i32
    scf.if %2 {
      %cst_8 = arith.constant 0.000000e+00 : f32
      %11 = vector.broadcast %cst_8 : f32 to vector<8x128xf32>
      %c0_9 = arith.constant 0 : index
      %c0_10 = arith.constant 0 : index
      %12 = vector.load %arg4[%c0_9, %c0_10] : memref<8x128xf32, #tpu.memory_space<vmem>>, vector<8x128xf32>
      tpu.vector_store %arg4[%c0_9, %c0_10], %11 {strides = array<i32>} : memref<8x128xf32, #tpu.memory_space<vmem>>, vector<8x128xf32>,
    } else {
    }
    %c0 = arith.constant 0 : index
    %c0_1 = arith.constant 0 : index
    %3 = vector.load %arg2[%c0, %c0_1] : memref<16x128xf32, #tpu.memory_space<vmem>>, vector<16x128xf32>
    %c0_2 = arith.constant 0 : index
    %c0_3 = arith.constant 0 : index
    %4 = vector.load %arg3[%c0_2, %c0_3] : memref<16x128xf32, #tpu.memory_space<vmem>>, vector<16x128xf32>
    %5 = arith.mulf %3, %4 : vector<16x128xf32>
    %c0_4 = arith.constant 0 : index
    %c0_5 = arith.constant 0 : index
    %6 = vector.load %arg4[%c0_4, %c0_5] : memref<8x128xf32, #tpu.memory_space<vmem>>, vector<8x128xf32>
    %7 = vector.shape_cast %5 : vector<16x128xf32> to vector<2x8x128xf32>
    %cst = arith.constant dense<0.000000e+00> : vector<8x128xf32>
    %8 = vector.multi_reduction <add>, %7, %cst [0] : vector<2x8x128xf32> to vector<8x128xf32>
    %9 = arith.addf %6, %8 : vector<8x128xf32>
    %c0_6 = arith.constant 0 : index
    %c0_7 = arith.constant 0 : index
    %10 = vector.load %arg4[%c0_6, %c0_7] : memref<8x128xf32, #tpu.memory_space<vmem>>, vector<8x128xf32>
    tpu.vector_store %arg4[%c0_6, %c0_7], %9 {strides = array<i32>} : memref<8x128xf32, #tpu.memory_space<vmem>>, vector<8x128xf32>,
    return
  }
  func.func @transform_0(%arg0: i32, %arg1: i32) -> (i32, i32) {
    %c1_i32 = arith.constant 1 : i32
    %0 = arith.muli %arg0, %c1_i32 : i32
    %1 = arith.addi %0, %arg1 : i32
    %c0_i32 = arith.constant 0 : i32
    %c0_i32_0 = arith.constant 0 : i32
    return %1, %c0_i32 : i32, i32
  }
  func.func @transform_1(%arg0: i32, %arg1: i32) -> (i32, i32) {
    %c1_i32 = arith.constant 1 : i32
    %0 = arith.muli %arg0, %c1_i32 : i32
    %1 = arith.addi %0, %arg1 : i32
    %c0_i32 = arith.constant 0 : i32
    %c0_i32_0 = arith.constant 0 : i32
    return %1, %c0_i32 : i32, i32
  }
  func.func @transform_2(%arg0: i32, %arg1: i32) -> (i32, i32) {
    %c0_i32 = arith.constant 0 : i32
    %c0_i32_0 = arith.constant 0 : i32
    return %arg0, %c0_i32 : i32, i32
  }
}

</mosaic_0001>

<llo_original>
// kernel: tpu_custom_call.1
$region0: #{tpu_custom_call.1}
  #allocation0 [shape = 'u32[]', space=smem, size = 0x4, offset = 0x4, fixed_abs, tag = 'smem constant byte address 0x4 - core index']
  #allocation1 [shape = 'u32[144,128]{1,0:T(1,128)}', space=vmem, size = 0x12000, scoped, tag = 'internal scratch']
  %s0 = inlined_call_operand.hbm [shape: f32[16,128], index: 0, kind: input, shape index: {}]
  %s1 = inlined_call_operand.hbm [shape: f32[16,128], index: 1, kind: input, shape index: {}]
  %s2 = inlined_call_operand.hbm [shape: f32[8,128], index: 2, kind: output, shape index: {}]
  %s3 = sld [smem:[#allocation0]]
  $region30: #{tpu_custom_call.1} parent=0
    _
  %s5 = ssub.s32 1, %s3
  %s6 = scalar_select 0, %s5, %s3
  $region1: #{tpu_custom_call.1} parent=0
    #allocation2 [shape = 'u8[8192]{0}', space=vmem, size = 0x2000, scoped, tag = 'input window, operand 0, single buffered']
    #allocation3 [shape = 's32[1]{0}', space=sflag, size = 0x4, scoped, tag = 'scoped memory for tpu_custom_call.1']
    #allocation4 [shape = 's32[1]{0}', space=sflag, size = 0x4, scoped, tag = 'scoped memory for tpu_custom_call.1']
    #allocation5 [shape = 'u8[8192]{0}', space=vmem, size = 0x2000, scoped, tag = 'input window, operand 1, single buffered']
    #allocation6 [shape = 's32[1]{0}', space=sflag, size = 0x4, scoped, tag = 'scoped memory for tpu_custom_call.1']
    #allocation7 [shape = 'u8[4096]{0}', space=vmem, size = 0x1000, scoped, tag = 'output window, operand 0, single buffered']
    %7 = vsyncpa [#allocation3], 0
    %8 = vsyncpa [#allocation6], 0
    %9 = vsyncpa [#allocation4], 0
    // Predicated region
    $region2: #{tpu_custom_call.1} parent=1 // pred_check
      _
    $region3: #{tpu_custom_call.1} parent=1 // pred_check_branch
      %11 = sbr.rel (0) target = $region5
    $region4: #{tpu_custom_call.1} parent=1 // pred_region
      %s12 = sadd.s32 0, 0
      %s13 = smul.u32 2, %s12
      %s15 = ssub.s32 256, 256
      %16 = vsyncadd [#allocation3], %s15
      %s17 = smul.addr %s13, 128
      %s18 = scalar_lea.hbm %s0, %s17
      %s19 = sshll.u32 [#allocation2], 4
      %s20 = int_to_ptr.vmem [resolvable:$true] %s19
      %25 = dma.hbm_to_vmem [thread:$0]  %s18, 256, %s20, [#allocation3], 128, 128, 8
    $region5: #{tpu_custom_call.1} parent=1 // pred_fallthru
      _
    // Predicated region
    $region6: #{tpu_custom_call.1} parent=1 // pred_check
      _
    $region7: #{tpu_custom_call.1} parent=1 // pred_check_branch
      %27 = sbr.rel (0) target = $region9
    $region8: #{tpu_custom_call.1} parent=1 // pred_region
      %s28 = sadd.s32 0, 0
      %s29 = smul.u32 2, %s28
      %s31 = ssub.s32 256, 256
      %32 = vsyncadd [#allocation6], %s31
      %s33 = smul.addr %s29, 128
      %s34 = scalar_lea.hbm %s1, %s33
      %s35 = sshll.u32 [#allocation5], 4
      %s36 = int_to_ptr.vmem [resolvable:$true] %s35
      %41 = dma.hbm_to_vmem [thread:$0]  %s34, 256, %s36, [#allocation6], 128, 128, 8
    $region9: #{tpu_custom_call.1} parent=1 // pred_fallthru
      _
    // Predicated region
    $region10: #{tpu_custom_call.1} parent=1 // pred_check
      _
    $region11: #{tpu_custom_call.1} parent=1 // pred_check_branch
      %43 = sbr.rel (0) target = $region13
    $region12: #{tpu_custom_call.1} parent=1 // pred_region
      %44 = dma.done [#allocation3], 256
    $region13: #{tpu_custom_call.1} parent=1 // pred_fallthru
      _
    // Predicated region
    $region14: #{tpu_custom_call.1} parent=1 // pred_check
      _
    $region15: #{tpu_custom_call.1} parent=1 // pred_check_branch
      %46 = sbr.rel (0) target = $region17
    $region16: #{tpu_custom_call.1} parent=1 // pred_region
      %47 = dma.done [#allocation6], 256
    $region17: #{tpu_custom_call.1} parent=1 // pred_fallthru
      _
    %s48 = sadd.s32 0, 0
    %s49 = smul.u32 2, %s48
    %s50 = sadd.s32 0, 0
    %s51 = smul.u32 2, %s50
    %p52 = scmp.eq.s32.totalorder 0, 0
    // Predicated region
    $region18: #{tpu_custom_call.1} parent=1 // pred_check
      %p53 = pneg %p52
    $region19: #{tpu_custom_call.1} parent=1 // pred_check_branch
      %55 = sbr.rel (%p53) target = $region21
    $region20: #{tpu_custom_call.1} parent=1 // pred_region
      %56 = vst [vmem:[#allocation7] sm:$0xff] 0.0
    $region21: #{tpu_custom_call.1} parent=1 // pred_fallthru
      _
    %v57 = vld [vmem:[#allocation2] sm:$0xff]
    %v58 = vld [vmem:[#allocation2 + $0x8] sm:$0xff]
    %v59 = vld [vmem:[#allocation5] sm:$0xff]
    %v60 = vld [vmem:[#allocation5 + $0x8] sm:$0xff]
    %v61 = vmul.f32 %v57, %v59
    %v62 = vmul.f32 %v58, %v60
    %v63 = vld [vmem:[#allocation7] sm:$0xff]
    %v64 = vadd.f32 %v61, %v62
    %v65 = vadd.f32 %v63, %v64
    %66 = vst [vmem:[#allocation7] sm:$0xff] %v65
    // Predicated region
    $region22: #{tpu_custom_call.1} parent=1 // pred_check
      _
    $region23: #{tpu_custom_call.1} parent=1 // pred_check_branch
      %68 = sbr.rel (0) target = $region25
    $region24: #{tpu_custom_call.1} parent=1 // pred_region
      %s70 = ssub.s32 128, 128
      %71 = vsyncadd [#allocation4], %s70
      %s73 = sshll.u32 [#allocation7], 4
      %s74 = int_to_ptr.vmem [resolvable:$true] %s73
      %76 = dma.vmem_to_hbm [thread:$0]  %s74, 128, %s2, [#allocation4]
    $region25: #{tpu_custom_call.1} parent=1 // pred_fallthru
      _
    // Predicated region
    $region26: #{tpu_custom_call.1} parent=1 // pred_check
      _
    $region27: #{tpu_custom_call.1} parent=1 // pred_check_branch
      %78 = sbr.rel (0) target = $region29
    $region28: #{tpu_custom_call.1} parent=1 // pred_region
      %79 = dma.done [#allocation4], 128
    $region29: #{tpu_custom_call.1} parent=1 // pred_fallthru
      _
    %80 = vsyncpa [#allocation3], 1
    %81 = vsyncpa [#allocation6], 1
    %82 = vsyncpa [#allocation4], 1

</llo_original>
